<compile_context>
chip_gen: v7x
topology: tpu7x:2x2x1
jax: 0.10.0
libtpu: 0.0.40
codegen_flags: <defaults>
</compile_context>

<pallas_src>
import functools

import jax
import jax.numpy as jnp
from jax.experimental import pallas as pl
from jax.experimental.pallas import tpu as pltpu


def _round_up(x, m):
    return ((x + m - 1) // m) * m


# --------------------------------------------------------------------------
# Fast path: features fully VMEM-resident, adj streamed once, no K loop.
# --------------------------------------------------------------------------
def _mean_agg_resident_kernel(adj_ref, feat_ref, out_ref, *, compute_dtype):
    a = adj_ref[...]
    f = feat_ref[...]
    if compute_dtype is not None:
        a = a.astype(compute_dtype)  # per-tile cast in VMEM, hidden under MXU
        f = f.astype(compute_dtype)
    out_ref[...] = jnp.dot(
        a, f, preferred_element_type=jnp.float32).astype(out_ref.dtype)


# --------------------------------------------------------------------------
# General path: classic (i, j, k) tiled matmul, output tile resident over k.
# --------------------------------------------------------------------------
def _mean_agg_tiled_kernel(adj_ref, feat_ref, out_ref, *, compute_dtype):
    @pl.when(pl.program_id(2) == 0)
    def _():
        out_ref[...] = jnp.zeros_like(out_ref)

    a = adj_ref[...]
    f = feat_ref[...]
    if compute_dtype is not None:
        a = a.astype(compute_dtype)
        f = f.astype(compute_dtype)
    out_ref[...] += jnp.dot(a, f, preferred_element_type=jnp.float32)


def mean_aggregator(adj, features, *, tm=512, tn=1024, tk=1024,
                    compute_dtype=None,
                    feat_resident_bytes=8 * 1024 * 1024):
    """to_feats = adj @ features with a tiled Pallas MXU kernel.

    compute_dtype: optional dtype the tiles are cast to *inside the kernel*
      (no extra HBM pass) before the dot.  None (default) keeps the native
      input dtype -> exact float32 parity.  Accumulation/output are float32.
    """
    N, K = adj.shape
    K2, D = features.shape
    assert K == K2, "adj.shape[1] must equal features.shape[0]"
    out_dtype = jnp.float32

    adj_item = jnp.dtype(adj.dtype).itemsize
    feat_item = jnp.dtype(features.dtype).itemsize
    feat_total_bytes = K * D * feat_item

    cost = pl.CostEstimate(
        flops=2 * N * K * D,
        transcendentals=0,
        bytes_accessed=N * K * adj_item + feat_total_bytes + N * D * 4,
    )

    vmem_budget = 40 * 1024 * 1024  # headroom below v7x's 64 MiB/TC ceiling

    # ---------------- fast path: features fully VMEM-resident ----------------
    if feat_total_bytes <= feat_resident_bytes:
        # Row tile of adj/out.  Keep >= 2 blocks on the single parallel grid
        # axis so both v7x TensorCores get work; multiples of 8 sublanes.
        if tm >= N:
            tm_f = N if N <= 8 else _round_up((N + 1) // 2, 8)
        else:
            tm_f = _round_up(tm, 8)

        def fast_footprint(t):
            # double-buffered adj tile + resident features + 2x f32 out tile
            return 2 * t * K * adj_item + feat_total_bytes + 2 * t * D * 4

        while fast_footprint(tm_f) > vmem_budget and tm_f > 8:
            tm_f = max(8, _round_up(tm_f // 2, 8))

        if fast_footprint(tm_f) <= vmem_budget:
            grid_m = pl.cdiv(N, tm_f)
            vmem_limit = int(min(max(fast_footprint(tm_f) + 8 * 1024 * 1024,
                                     32 * 1024 * 1024), 48 * 1024 * 1024))
            return pl.pallas_call(
                functools.partial(_mean_agg_resident_kernel,
                                  compute_dtype=compute_dtype),
                out_shape=jax.ShapeDtypeStruct((N, D), out_dtype),
                grid_spec=pl.GridSpec(
                    grid=(grid_m,),
                    in_specs=[
                        pl.BlockSpec((tm_f, K), lambda i: (i, 0)),  # adj rows
                        pl.BlockSpec((K, D), lambda i: (0, 0)),     # resident
                    ],
                    out_specs=pl.BlockSpec((tm_f, D), lambda i: (i, 0)),
                ),
                compiler_params=pltpu.CompilerParams(
                    dimension_semantics=("parallel",),
                    vmem_limit_bytes=vmem_limit,
                ),
                cost_estimate=cost,
            )(adj, features)

    # ---------------- general path: (i, j, k) tiled matmul ----------------
    def fit_tile(t, dim, align):
        # A full-extent block is always legal; otherwise align the tile.
        return dim if t >= dim else _round_up(t, align)

    tm_g = fit_tile(tm, N, 16)    # 16: bf16 packed-sublane alignment
    tn_g = fit_tile(tn, D, 256)   # 256: v6e/v7x MXU feed
    tk_g = fit_tile(tk, K, 256)

    def gen_footprint(tm_, tn_, tk_):
        return (2 * (tm_ * tk_ * adj_item + tk_ * tn_ * feat_item)
                + 2 * tm_ * tn_ * 4)

    # Shrink tk first (costs only more k-steps, no lost reuse), then tm.
    while gen_footprint(tm_g, tn_g, tk_g) > vmem_budget and tk_g > 256:
        tk_g = max(256, _round_up(tk_g // 2, 256))
    while gen_footprint(tm_g, tn_g, tk_g) > vmem_budget and tm_g > 16:
        tm_g = max(16, _round_up(tm_g // 2, 16))

    # Only the reduction axis needs explicit zero padding; partial N/D blocks
    # are handled by Pallas masked writes (no extra passes / output slice).
    Kp = _round_up(K, tk_g)
    adj_p = adj if Kp == K else jnp.pad(adj, ((0, 0), (0, Kp - K)))
    feat_p = features if Kp == K else jnp.pad(features, ((0, Kp - K), (0, 0)))

    grid = (pl.cdiv(N, tm_g), pl.cdiv(D, tn_g), Kp // tk_g)
    vmem_limit = int(min(max(gen_footprint(tm_g, tn_g, tk_g) + 8 * 1024 * 1024,
                             32 * 1024 * 1024), 48 * 1024 * 1024))

    return pl.pallas_call(
        functools.partial(_mean_agg_tiled_kernel, compute_dtype=compute_dtype),
        out_shape=jax.ShapeDtypeStruct((N, D), out_dtype),
        grid_spec=pl.GridSpec(
            grid=grid,
            in_specs=[
                pl.BlockSpec((tm_g, tk_g), lambda i, j, k: (i, k)),  # adj
                pl.BlockSpec((tk_g, tn_g), lambda i, j, k: (k, j)),  # features
            ],
            out_specs=pl.BlockSpec((tm_g, tn_g), lambda i, j, k: (i, j)),
        ),
        compiler_params=pltpu.CompilerParams(
            dimension_semantics=("parallel", "parallel", "arbitrary"),
            vmem_limit_bytes=vmem_limit,
        ),
        cost_estimate=cost,
    )(adj_p, feat_p)


if __name__ == "__main__":
    # Small synthetic graph with deliberately non-divisible shapes:
    # N target nodes, M neighbor-source nodes, D feature dims.
    N, M, D = 200, 300, 96
    key = jax.random.PRNGKey(0)
    k_adj, k_feat = jax.random.split(key)

    # Row-normalized ("mean") adjacency, as GraphSAGE's MeanAggregator expects.
    raw = (jax.random.uniform(k_adj, (N, M)) > 0.9).astype(jnp.float32)
    raw = raw.at[jnp.arange(N), jnp.arange(N) % M].set(1.0)  # >=1 neighbor/row
    adj = raw / jnp.sum(raw, axis=1, keepdims=True)

    features = jax.random.normal(k_feat, (M, D), dtype=jnp.float32)

    ref = adj @ features  # plain JAX matmul == torch adj.mm(features)

    # 1) Default: exact float32, features-resident fast path (adj streamed once).
    out = jax.block_until_ready(mean_aggregator(adj, features))
    assert out.shape == (N, D) and out.dtype == jnp.float32
    assert jnp.allclose(out, ref, atol=1e-3, rtol=1e-3), "f32 fast-path mismatch"

    # 2) bf16 MXU inputs (cast per-tile inside the kernel), f32 accumulation.
    out_bf16 = jax.block_until_ready(
        mean_aggregator(adj, features, compute_dtype=jnp.bfloat16))
    assert out_bf16.shape == (N, D) and out_bf16.dtype == jnp.float32
    assert jnp.allclose(out_bf16, ref, atol=5e-2, rtol=5e-2), "bf16 mismatch"

    # 3) Force the general tiled (i, j, k) path to exercise it as well.
    out_gen = jax.block_until_ready(
        mean_aggregator(adj, features, feat_resident_bytes=0))
    assert out_gen.shape == (N, D)
    assert jnp.allclose(out_gen, ref, atol=1e-3, rtol=1e-3), "tiled-path mismatch"

    print("KERNEL_OK")
</pallas_src>

<mosaic_0001>
module attributes {stable_mosaic.version = 11 : i64} {
  func.func @_mean_agg_resident_kernel(%arg0: i32, %arg1: memref<104x300xf32, #tpu.memory_space<vmem>>, %arg2: memref<300x96xf32, #tpu.memory_space<vmem>>, %arg3: memref<104x96xf32, #tpu.memory_space<vmem>>) attributes {dimension_semantics = [#tpu.dimension_semantics<parallel>], iteration_bounds = array<i64: 2>, scalar_prefetch = 0 : i64, scratch_operands = 0 : i64, tpu.core_type = #tpu.core_type<tc>, window_params = [{transform_indices = @transform_0, window_bounds = array<i64: 104, 300>}, {pipeline_mode = #tpu.pipeline_mode<synchronous>, transform_indices = @transform_1, window_bounds = array<i64: 300, 96>}, {transform_indices = @transform_2, window_bounds = array<i64: 104, 96>}]} {
    %c0 = arith.constant 0 : index
    %c0_0 = arith.constant 0 : index
    %0 = vector.load %arg1[%c0, %c0_0] : memref<104x300xf32, #tpu.memory_space<vmem>>, vector<104x300xf32>
    %c0_1 = arith.constant 0 : index
    %c0_2 = arith.constant 0 : index
    %1 = vector.load %arg2[%c0_1, %c0_2] : memref<300x96xf32, #tpu.memory_space<vmem>>, vector<300x96xf32>
    %cst = arith.constant dense<0.000000e+00> : vector<104x96xf32>
    %2 = tpu.matmul %0, %1, %cst {dimension_numbers = #tpu.dot_dimension_numbers<[1], [0], [0], [1], [0, 0, 1, 1], [], []>} : vector<104x300xf32>, vector<300x96xf32>, vector<104x96xf32> -> vector<104x96xf32>
    %c0_3 = arith.constant 0 : index
    %c0_4 = arith.constant 0 : index
    %3 = vector.load %arg3[%c0_3, %c0_4] : memref<104x96xf32, #tpu.memory_space<vmem>>, vector<104x96xf32>
    tpu.vector_store %arg3[%c0_3, %c0_4], %2 {strides = array<i32>} : memref<104x96xf32, #tpu.memory_space<vmem>>, vector<104x96xf32>,
    return
  }
  func.func @transform_0(%arg0: i32) -> (i32, i32) {
    %c0_i32 = arith.constant 0 : i32
    %c0_i32_0 = arith.constant 0 : i32
    return %arg0, %c0_i32 : i32, i32
  }
  func.func @transform_1(%arg0: i32) -> (i32, i32) {
    %c0_i32 = arith.constant 0 : i32
    %c0_i32_0 = arith.constant 0 : i32
    %c0_i32_1 = arith.constant 0 : i32
    return %c0_i32, %c0_i32_0 : i32, i32
  }
  func.func @transform_2(%arg0: i32) -> (i32, i32) {
    %c0_i32 = arith.constant 0 : i32
    %c0_i32_0 = arith.constant 0 : i32
    return %arg0, %c0_i32 : i32, i32
  }
}

</mosaic_0001>

<llo_original>
// kernel: tpu_custom_call.1
$region0: #{tpu_custom_call.1}
  #allocation0 [shape = 'u32[]', space=smem, size = 0x4, offset = 0x4, fixed_abs, tag = 'smem constant byte address 0x4 - core index']
  #allocation1 [shape = 'u32[144,128]{1,0:T(1,128)}', space=vmem, size = 0x12000, scoped, tag = 'internal scratch']
  %s0 = inlined_call_operand.hbm [shape: f32[200,300], index: 0, kind: input, shape index: {}]
  %s1 = inlined_call_operand.vmem [shape: f32[300,96], index: 1, kind: input, shape index: {}]
  %s2 = inlined_call_operand.vmem [shape: f32[200,96], index: 2, kind: output, shape index: {}]
  %s3 = sld [smem:[#allocation0]]
  $region93: #{tpu_custom_call.1} parent=0
    _
  %s5 = ssub.s32 1, %s3
  %s6 = scalar_select 0, %s5, %s3
  $region1: #{tpu_custom_call.1} parent=0
    #allocation2 [shape = 'u8[319488]{0}', space=vmem, size = 0x4e000, scoped, tag = 'input window, operand 0']
    #allocation3 [shape = 's32[2]{0}', space=sflag, size = 0x8, scoped, tag = 'scoped memory for tpu_custom_call.1']
    #allocation4 [shape = 'u8[106496]{0}', space=vmem, size = 0x1a000, scoped, tag = 'output window, operand 0']
    %7 = vsyncpa [#allocation3], 0
    %s8 = scalar_lea.sflag [#allocation3], 1
    %9 = vsyncpa %s8, 0
    loop: start=0, step=1, limit=4
    $region2: #{tpu_custom_call.1} parent=1 // loop_pre_header
      _
    $region3: #{tpu_custom_call.1} parent=1 // loop_header
      %s11 = sphi 0, %s15
      %p12 = scmp.ge.s32.totalorder %s11, 4
      %s21 = sphi 0, %s23
      %s24 = sphi 0, %s21
      %s25 = sphi 0, %s24
      %s41 = sphi 0, %s25
      %s45 = sphi 0, %s45
      %s47 = sphi 0, %s45
      %s48 = sphi 0, %s47
      %s62 = sphi 0, %s48
      %s68 = sphi 0, %s70
      %s71 = sphi 0, %s68
      %s72 = sphi 0, %s71
      %s88 = sphi 0, %s72
    $region4: #{tpu_custom_call.1} parent=1 // loop_header_branch
      %14 = sbr.rel (%p12) target = $region8
    $region5: #{tpu_custom_call.1} parent=1 // loop_body
      %s16 = ssub.s32 %s11, 1
      %s17 = ssub.s32 %s11, 2
      %s18 = sadd.s32 %s11, 1
      %s19 = ssub.s32 %s11, %s18
      %p20 = scmp.eq.s32.totalorder %s19, 0
      %s22 = sadd.s32 %s21, 1
      %s23 = scalar_select %p20, %s21, %s22
      %p26 = pneg %p20
      %p27 = scmp.eq.s32.totalorder %s11, 1
      %p28 = por %p26, %p27
      %p29 = scmp.ne.s32.totalorder %s21, %s24
      %p30 = scmp.eq.s32.totalorder %s11, 0
      %p31 = por %p29, %p30
      %p32 = scmp.ne.s32.totalorder %s21, %s24
      %p33 = scmp.eq.s32.totalorder %s16, 1
      %p34 = por %p32, %p33
      %p35 = scmp.ne.s32.totalorder %s24, %s25
      %p36 = scmp.eq.s32.totalorder %s16, 0
      %p37 = por %p35, %p36
      %p38 = scmp.ne.s32.totalorder %s24, %s25
      %p39 = scmp.eq.s32.totalorder %s17, 1
      %p40 = por %p38, %p39
      %p42 = scmp.ne.s32.totalorder %s25, %s41
      %p43 = scmp.eq.s32.totalorder %s17, 0
      %p44 = por %p42, %p43
      %s46 = sadd.s32 %s45, 1
      %p49 = scmp.eq.s32.totalorder %s11, 1
      %p50 = scmp.ne.s32.totalorder %s45, %s47
      %p51 = scmp.eq.s32.totalorder %s11, 0
      %p52 = por %p50, %p51
      %p53 = scmp.ne.s32.totalorder %s45, %s47
      %p54 = scmp.eq.s32.totalorder %s16, 1
      %p55 = por %p53, %p54
      %p56 = scmp.ne.s32.totalorder %s47, %s48
      %p57 = scmp.eq.s32.totalorder %s16, 0
      %p58 = por %p56, %p57
      %p59 = scmp.ne.s32.totalorder %s47, %s48
      %p60 = scmp.eq.s32.totalorder %s17, 1
      %p61 = por %p59, %p60
      %p63 = scmp.ne.s32.totalorder %s48, %s62
      %p64 = scmp.eq.s32.totalorder %s17, 0
      %p65 = por %p63, %p64
      %s66 = ssub.s32 %s11, %s18
      %p67 = scmp.eq.s32.totalorder %s66, 0
      %s69 = sadd.s32 %s68, 1
      %s70 = scalar_select %p67, %s68, %s69
      %p73 = pneg %p67
      %p74 = scmp.eq.s32.totalorder %s11, 1
      %p75 = por %p73, %p74
      %p76 = scmp.ne.s32.totalorder %s68, %s71
      %p77 = scmp.eq.s32.totalorder %s11, 0
      %p78 = por %p76, %p77
      %p79 = scmp.ne.s32.totalorder %s68, %s71
      %p80 = scmp.eq.s32.totalorder %s16, 1
      %p81 = por %p79, %p80
      %p82 = scmp.ne.s32.totalorder %s71, %s72
      %p83 = scmp.eq.s32.totalorder %s16, 0
      %p84 = por %p82, %p83
      %p85 = scmp.ne.s32.totalorder %s71, %s72
      %p86 = scmp.eq.s32.totalorder %s17, 1
      %p87 = por %p85, %p86
      %p89 = scmp.ne.s32.totalorder %s72, %s88
      %p90 = scmp.eq.s32.totalorder %s17, 0
      %p91 = por %p89, %p90
      %p92 = scmp.le.s32.totalorder 1, %s11
      %p93 = scmp.lt.s32.totalorder %s11, 3
      %p94 = pnand %p92, %p93
      %p95 = pneg %p94
      // Predicated region
      $region9: #{tpu_custom_call.1} parent=5 // pred_check
        _
      $region10: #{tpu_custom_call.1} parent=5 // pred_check_branch
        %97 = sbr.rel (%p94) target = $region12
      $region11: #{tpu_custom_call.1} parent=5 // pred_region
        %s98 = ssub.s32 %s11, 1
        // Predicated region
        $region13: #{tpu_custom_call.1} parent=11 // pred_check
          %p99 = pneg %p58
        $region14: #{tpu_custom_call.1} parent=11 // pred_check_branch
          %101 = sbr.rel (%p99) target = $region16
        $region15: #{tpu_custom_call.1} parent=11 // pred_region
          _
        $region16: #{tpu_custom_call.1} parent=11 // pred_fallthru
          _
      $region12: #{tpu_custom_call.1} parent=5 // pred_fallthru
        _
      %p102 = scmp.lt.s32.totalorder %s11, 2
      // Predicated region
      $region17: #{tpu_custom_call.1} parent=5 // pred_check
        %p103 = pneg %p102
      $region18: #{tpu_custom_call.1} parent=5 // pred_check_branch
        %105 = sbr.rel (%p103) target = $region20
      $region19: #{tpu_custom_call.1} parent=5 // pred_region
        // Predicated region
        $region21: #{tpu_custom_call.1} parent=19 // pred_check
          %p106 = pneg %p31
        $region22: #{tpu_custom_call.1} parent=19 // pred_check_branch
          %108 = sbr.rel (%p106) target = $region24
        $region23: #{tpu_custom_call.1} parent=19 // pred_region
          %s109 = sand.u32 %s21, 1
          %s110 = scalar_lea.sflag [#allocation3], %s109
          %s111 = sand.u32 %s21, 1
          %s112 = smul.addr %s111, 312
          %s113 = scalar_lea.vmem [#allocation2], %s112
          %s114 = smul.u32 13, %s11
          %s115 = ssub.s32 25, %s114
          %p116 = scmp.lt.s32.totalorder %s115, 13
          %s117 = scalar_select %p116, %s115, 13
          %s118 = smul.u32 128, %s117
          %s119 = smul.u32 %s118, 3
          %s121 = ssub.s32 4992, %s119
          %122 = vsyncadd %s110, %s121
          %p123 = scmp.ne.s32.totalorder 0, %s119
          %s124 = smul.addr %s114, 3
          %s125 = smul.addr %s124, 128
          %s126 = scalar_lea.hbm %s0, %s125
          %s127 = smul.u32 24, %s117
          %s128 = sshll.u32 %s113, 4
          %s129 = int_to_ptr.vmem [resolvable:$true] %s128
          %s130 = sshll.u32 %s127, 4
          %134 = dma.hbm_to_vmem [thread:$0]  (%p123), %s126, %s130, %s129, %s110, 384, 384, 24
        $region24: #{tpu_custom_call.1} parent=19 // pred_fallthru
          _
      $region20: #{tpu_custom_call.1} parent=5 // pred_fallthru
        _
      %p135 = scmp.le.s32.totalorder 1, %s11
      %p136 = scmp.lt.s32.totalorder %s11, 3
      %p137 = pnand %p135, %p136
      %p138 = pneg %p137
      // Predicated region
      $region25: #{tpu_custom_call.1} parent=5 // pred_check
        _
      $region26: #{tpu_custom_call.1} parent=5 // pred_check_branch
        %140 = sbr.rel (%p137) target = $region28
      $region27: #{tpu_custom_call.1} parent=5 // pred_region
        %s141 = ssub.s32 %s11, 1
        %s142 = sand.u32 %s24, 1
        %s143 = scalar_lea.sflag [#allocation3], %s142
        %s144 = sand.u32 %s24, 1
        %s145 = smul.addr %s144, 312
        %s146 = scalar_lea.vmem [#allocation2], %s145
        // Predicated region
        $region29: #{tpu_custom_call.1} parent=27 // pred_check
          %p147 = pneg %p37
        $region30: #{tpu_custom_call.1} parent=27 // pred_check_branch
          %149 = sbr.rel (%p147) target = $region32
        $region31: #{tpu_custom_call.1} parent=27 // pred_region
          %150 = dma.done %s143, 4992
        $region32: #{tpu_custom_call.1} parent=27 // pred_fallthru
          _
        %s151 = sand.u32 %s24, 1
        %s152 = scalar_lea.sflag [#allocation3], %s151
        %s153 = sand.u32 %s24, 1
        %s154 = smul.addr %s153, 312
        %s155 = scalar_lea.vmem [#allocation2], %s154
        %p156 = pneg %p37
        %p157 = pneg %p34
        %p158 = pneg %p58
        %p159 = pneg %p55
        %p160 = pneg %p84
        %p161 = pneg %p81
        %s162 = sand.u32 %s71, 1
        %s163 = sand.u32 %s71, 1
        %s164 = smul.addr %s163, 104
        %s165 = scalar_lea.vmem [#allocation4], %s164
        %s166 = smul.u32 13, %s16
        %s167 = ssub.s32 25, %s166
        %p168 = scmp.lt.s32.totalorder %s167, 13
        %s169 = scalar_select %p168, %s167, 13
        %s170 = smul.u32 128, %s169
        %s171 = smul.u32 %s170, 3
        %s172 = smul.u32 13, %s16
        %s173 = ssub.s32 25, %s172
        %p174 = scmp.lt.s32.totalorder %s173, 13
        %s175 = scalar_select %p174, %s173, 13
        %s176 = smul.u32 128, %s175
        %v177 = vld [vmem:[%s146] sm:$0xff]
        %v178 = vld [vmem:[%s146 + $0x8] sm:$0xff]
        %v179 = vld [vmem:[%s146 + $0x10] sm:$0xff]
        %v180 = vld [vmem:[%s146 + $0x18] sm:$0xff]
        %v181 = vld [vmem:[%s146 + $0x20] sm:$0xff]
        %v182 = vld [vmem:[%s146 + $0x28] sm:$0xff]
        %v183 = vld [vmem:[%s146 + $0x30] sm:$0xff]
        %v184 = vld [vmem:[%s146 + $0x38] sm:$0xff]
        %v185 = vld [vmem:[%s146 + $0x40] sm:$0xff]
        %v186 = vld [vmem:[%s146 + $0x48] sm:$0xff]
        %v187 = vld [vmem:[%s146 + $0x50] sm:$0xff]
        %v188 = vld [vmem:[%s146 + $0x58] sm:$0xff]
        %v189 = vld [vmem:[%s146 + $0x60] sm:$0xff]
        %v190 = vld [vmem:[%s146 + $0x68] sm:$0xff]
        %v191 = vld [vmem:[%s146 + $0x70] sm:$0xff]
        %v192 = vld [vmem:[%s146 + $0x78] sm:$0xff]
        %v193 = vld [vmem:[%s146 + $0x80] sm:$0xff]
        %v194 = vld [vmem:[%s146 + $0x88] sm:$0xff]
        %v195 = vld [vmem:[%s146 + $0x90] sm:$0xff]
        %v196 = vld [vmem:[%s146 + $0x98] sm:$0xff]
        %v197 = vld [vmem:[%s146 + $0xa0] sm:$0xff]
        %v198 = vld [vmem:[%s146 + $0xa8] sm:$0xff]
        %v199 = vld [vmem:[%s146 + $0xb0] sm:$0xff]
        %v200 = vld [vmem:[%s146 + $0xb8] sm:$0xff]
        %v201 = vld [vmem:[%s146 + $0xc0] sm:$0xff]
        %v202 = vld [vmem:[%s146 + $0xc8] sm:$0xff]
        %v203 = vld [vmem:[%s146 + $0xd0] sm:$0xff]
        %v204 = vld [vmem:[%s146 + $0xd8] sm:$0xff]
        %v205 = vld [vmem:[%s146 + $0xe0] sm:$0xff]
        %v206 = vld [vmem:[%s146 + $0xe8] sm:$0xff]
        %v207 = vld [vmem:[%s146 + $0xf0] sm:$0xff]
        %v208 = vld [vmem:[%s146 + $0xf8] sm:$0xff]
        %v209 = vld [vmem:[%s146 + $0x100] sm:$0xff]
        %v210 = vld [vmem:[%s146 + $0x108] sm:$0xff]
        %v211 = vld [vmem:[%s146 + $0x110] sm:$0xff]
        %v212 = vld [vmem:[%s146 + $0x118] sm:$0xff]
        %v213 = vld [vmem:[%s146 + $0x120] sm:$0xff]
        %v214 = vld [vmem:[%s146 + $0x128] sm:$0xff]
        %v215 = vld [vmem:[%s146 + $0x130] sm:$0xff]
        %v216 = vld [vmem:[%s1] sm:$0xff]
        %v217 = vld [vmem:[%s1 + $0x8] sm:$0xff]
        %v218 = vld [vmem:[%s1 + $0x10] sm:$0xff]
        %v219 = vld [vmem:[%s1 + $0x18] sm:$0xff]
        %v220 = vld [vmem:[%s1 + $0x20] sm:$0xff]
        %v221 = vld [vmem:[%s1 + $0x28] sm:$0xff]
        %v222 = vld [vmem:[%s1 + $0x30] sm:$0xff]
        %v223 = vld [vmem:[%s1 + $0x38] sm:$0xff]
        %v224 = vld [vmem:[%s1 + $0x40] sm:$0xff]
        %v225 = vld [vmem:[%s1 + $0x48] sm:$0xff]
        %v226 = vld [vmem:[%s1 + $0x50] sm:$0xff]
        %v227 = vld [vmem:[%s1 + $0x58] sm:$0xff]
        %v228 = vld [vmem:[%s1 + $0x60] sm:$0xff]
        %v229 = vld [vmem:[%s1 + $0x68] sm:$0xff]
        %v230 = vld [vmem:[%s1 + $0x70] sm:$0xff]
        %v231 = vld [vmem:[%s1 + $0x78] sm:$0xff]
        %v232 = vld [vmem:[%s1 + $0x80] sm:$0xff]
        %v233 = vld [vmem:[%s1 + $0x88] sm:$0xff]
        %v234 = vld [vmem:[%s1 + $0x90] sm:$0xff]
        %v235 = vld [vmem:[%s1 + $0x98] sm:$0xff]
        %v236 = vld [vmem:[%s1 + $0xa0] sm:$0xff]
        %v237 = vld [vmem:[%s1 + $0xa8] sm:$0xff]
        %v238 = vld [vmem:[%s1 + $0xb0] sm:$0xff]
        %v239 = vld [vmem:[%s1 + $0xb8] sm:$0xff]
        %v240 = vld [vmem:[%s1 + $0xc0] sm:$0xff]
        %v241 = vld [vmem:[%s1 + $0xc8] sm:$0xff]
        %v242 = vld [vmem:[%s1 + $0xd0] sm:$0xff]
        %v243 = vld [vmem:[%s1 + $0xd8] sm:$0xff]
        %v244 = vld [vmem:[%s1 + $0xe0] sm:$0xff]
        %v245 = vld [vmem:[%s1 + $0xe8] sm:$0xff]
        %v246 = vld [vmem:[%s1 + $0xf0] sm:$0xff]
        %v247 = vld [vmem:[%s1 + $0xf8] sm:$0xff]
        %v248 = vld [vmem:[%s1 + $0x100] sm:$0xff]
        %v249 = vld [vmem:[%s1 + $0x108] sm:$0xff]
        %v250 = vld [vmem:[%s1 + $0x110] sm:$0xff]
        %v251 = vld [vmem:[%s1 + $0x118] sm:$0xff]
        %v252 = vld [vmem:[%s1 + $0x120] sm:$0xff]
        %v253 = vld [vmem:[%s1 + $0x128] sm:$0xf]
        %vm254 = vcmask 359424
        %v256 = vsel %vm254, %v179, 0
        %v259 = vsel %vm254, %v182, 0
        %v262 = vsel %vm254, %v185, 0
        %v265 = vsel %vm254, %v188, 0
        %v268 = vsel %vm254, %v191, 0
        %v271 = vsel %vm254, %v194, 0
        %v274 = vsel %vm254, %v197, 0
        %v277 = vsel %vm254, %v200, 0
        %v280 = vsel %vm254, %v203, 0
        %v283 = vsel %vm254, %v206, 0
        %v286 = vsel %vm254, %v209, 0
        %v289 = vsel %vm254, %v212, 0
        %v292 = vsel %vm254, %v215, 0
        %vm294 = vcmask 1043456
        %v296 = vsel %vm294, %v253, 0
        %298 = vmatprep.subr.mxu0 0.0
        %299 = vmatpush1.msra.mxu0 %v216
        %300 = vmatprep.subr.mxu0 0.0
        %301 = vmatpush1.msra.mxu0 %v217
        %302 = vmatprep.subr.mxu0 0.0
        %303 = vmatpush1.msra.mxu0 %v218
        %304 = vmatprep.subr.mxu0 0.0
        %305 = vmatpush1.msra.mxu0 %v219
        %306 = vmatprep.subr.mxu0 0.0
        %307 = vmatpush1.msra.mxu0 %v220
        %308 = vmatprep.subr.mxu0 0.0
        %309 = vmatpush1.msra.mxu0 %v221
        %310 = vmatprep.subr.mxu0 0.0
        %311 = vmatpush1.msra.mxu0 %v222
        %312 = vmatprep.subr.mxu0 0.0
        %313 = vmatpush1.msra.mxu0 %v223
        %314 = vmatprep.subr.mxu0 0.0
        %315 = vmatpush1.msra.mxu0 %v224
        %316 = vmatprep.subr.mxu0 0.0
        %317 = vmatpush1.msra.mxu0 %v225
        %318 = vmatprep.subr.mxu0 0.0
        %319 = vmatpush1.msra.mxu0 %v226
        %320 = vmatprep.subr.mxu0 0.0
        %321 = vmatpush1.msra.mxu0 %v227
        %322 = vmatprep.subr.mxu0 0.0
        %323 = vmatpush1.msra.mxu0 %v228
        %324 = vmatprep.subr.mxu0 0.0
        %325 = vmatpush1.msra.mxu0 %v229
        %326 = vmatprep.subr.mxu0 0.0
        %327 = vmatpush1.msra.mxu0 %v230
        %328 = vmatprep.subr.mxu0 0.0
        %329 = vmatpush1.msra.mxu0 %v231
        %330 = vmatprep.subr.mxu0 0.0
        %331 = vmatpush1.msra.mxu0 %v232
        %332 = vmatprep.subr.mxu0 0.0
        %333 = vmatpush1.msra.mxu0 %v233
        %334 = vmatprep.subr.mxu0 0.0
        %335 = vmatpush1.msra.mxu0 %v234
        %336 = vmatprep.subr.mxu0 0.0
        %337 = vmatpush1.msra.mxu0 %v235
        %338 = vmatprep.subr.mxu0 0.0
        %339 = vmatpush1.msra.mxu0 %v236
        %340 = vmatprep.subr.mxu0 0.0
        %341 = vmatpush1.msra.mxu0 %v237
        %342 = vmatprep.subr.mxu0 0.0
        %343 = vmatpush1.msra.mxu0 %v238
        %344 = vmatprep.subr.mxu0 0.0
        %345 = vmatpush1.msra.mxu0 %v239
        %346 = vmatprep.subr.mxu0 0.0
        %347 = vmatpush1.msra.mxu0 %v240
        %348 = vmatprep.subr.mxu0 0.0
        %349 = vmatpush1.msra.mxu0 %v241
        %350 = vmatprep.subr.mxu0 0.0
        %351 = vmatpush1.msra.mxu0 %v242
        %352 = vmatprep.subr.mxu0 0.0
        %353 = vmatpush1.msra.mxu0 %v243
        %354 = vmatprep.subr.mxu0 0.0
        %355 = vmatpush1.msra.mxu0 %v244
        %356 = vmatprep.subr.mxu0 0.0
        %357 = vmatpush1.msra.mxu0 %v245
        %358 = vmatprep.subr.mxu0 0.0
        %359 = vmatpush1.msra.mxu0 %v246
        %360 = vmatprep.subr.mxu0 0.0
        %361 = vmatpush1.msra.mxu0 %v247
        %362 = vmatprep.mubr.f32.mxu0 %v178
        %363 = vmatmul.mubr.f32.gmra.mrb[0].mxu0 %v177
        %v364 = vpop.f32.mrb[0].mxu0
        %v365 = vadd.f32 0.0, %v364
        %v366 = vpop.f32.mrb[0].mxu0
        %367 = vmatprep.mubr.f32.mxu0 %v181
        %368 = vmatmul.mubr.f32.gmra.mrb[0].mxu0 %v180
        %v369 = vpop.f32.mrb[0].mxu0
        %v370 = vadd.f32 0.0, %v369
        %v371 = vpop.f32.mrb[0].mxu0
        %372 = vmatprep.mubr.f32.mxu0 %v184
        %373 = vmatmul.mubr.f32.gmra.mrb[0].mxu0 %v183
        %v374 = vpop.f32.mrb[0].mxu0
        %v375 = vadd.f32 0.0, %v374
        %v376 = vpop.f32.mrb[0].mxu0
        %377 = vmatprep.mubr.f32.mxu0 %v187
        %378 = vmatmul.mubr.f32.gmra.mrb[0].mxu0 %v186
        %v379 = vpop.f32.mrb[0].mxu0
        %v380 = vadd.f32 0.0, %v379
        %v381 = vpop.f32.mrb[0].mxu0
        %382 = vmatprep.mubr.f32.mxu0 %v190
        %383 = vmatmul.mubr.f32.gmra.mrb[0].mxu0 %v189
        %v384 = vpop.f32.mrb[0].mxu0
        %v385 = vadd.f32 0.0, %v384
        %v386 = vpop.f32.mrb[0].mxu0
        %387 = vmatprep.mubr.f32.mxu0 %v193
        %388 = vmatmul.mubr.f32.gmra.mrb[0].mxu0 %v192
        %v389 = vpop.f32.mrb[0].mxu0
        %v390 = vadd.f32 0.0, %v389
        %v391 = vpop.f32.mrb[0].mxu0
        %392 = vmatprep.mubr.f32.mxu0 %v196
        %393 = vmatmul.mubr.f32.gmra.mrb[0].mxu0 %v195
        %v394 = vpop.f32.mrb[0].mxu0
        %v395 = vadd.f32 0.0, %v394
        %v396 = vpop.f32.mrb[0].mxu0
        %397 = vmatprep.mubr.f32.mxu0 %v199
        %398 = vmatmul.mubr.f32.gmra.mrb[0].mxu0 %v198
        %v399 = vpop.f32.mrb[0].mxu0
        %v400 = vadd.f32 0.0, %v399
        %v401 = vpop.f32.mrb[0].mxu0
        %402 = vmatprep.mubr.f32.mxu0 %v202
        %403 = vmatmul.mubr.f32.gmra.mrb[0].mxu0 %v201
        %v404 = vpop.f32.mrb[0].mxu0
        %v405 = vadd.f32 0.0, %v404
        %v406 = vpop.f32.mrb[0].mxu0
        %407 = vmatprep.mubr.f32.mxu0 %v205
        %408 = vmatmul.mubr.f32.gmra.mrb[0].mxu0 %v204
        %v409 = vpop.f32.mrb[0].mxu0
        %v410 = vadd.f32 0.0, %v409
        %v411 = vpop.f32.mrb[0].mxu0
        %412 = vmatprep.mubr.f32.mxu0 %v208
        %413 = vmatmul.mubr.f32.gmra.mrb[0].mxu0 %v207
        %v414 = vpop.f32.mrb[0].mxu0
        %v415 = vadd.f32 0.0, %v414
        %v416 = vpop.f32.mrb[0].mxu0
        %417 = vmatprep.mubr.f32.mxu0 %v211
        %418 = vmatmul.mubr.f32.gmra.mrb[0].mxu0 %v210
        %v419 = vpop.f32.mrb[0].mxu0
        %v420 = vadd.f32 0.0, %v419
        %v421 = vpop.f32.mrb[0].mxu0
        %422 = vmatprep.mubr.f32.mxu0 %v214
        %423 = vmatmul.mubr.f32.gmra.mrb[0].mxu0 %v213
        %v424 = vpop.f32.mrb[0].mxu0
        %v425 = vadd.f32 0.0, %v424
        %v426 = vpop.f32.mrb[0].mxu0
        %427 = vdwg.mxu0
        %428 = vmatprep.subr.mxu0 0.0
        %429 = vmatpush1.msra.mxu0 %v248
        %430 = vmatprep.subr.mxu0 0.0
        %431 = vmatpush1.msra.mxu0 %v249
        %432 = vmatprep.subr.mxu0 0.0
        %433 = vmatpush1.msra.mxu0 %v250
        %434 = vmatprep.subr.mxu0 0.0
        %435 = vmatpush1.msra.mxu0 %v251
        %436 = vmatprep.subr.mxu0 0.0
        %437 = vmatpush1.msra.mxu0 %v252
        %438 = vmatprep.subr.mxu0 0.0
        %439 = vmatpush1.msra.mxu0 %v296
        %440 = vmatprep.subr.mxu0 0.0
        %441 = vmatpush1.msra.mxu0 0.0
        %442 = vmatprep.subr.mxu0 0.0
        %443 = vmatpush1.msra.mxu0 0.0
        %444 = vmatprep.subr.mxu0 0.0
        %445 = vmatpush1.msra.mxu0 0.0
        %446 = vmatprep.subr.mxu0 0.0
        %447 = vmatpush1.msra.mxu0 0.0
        %448 = vmatprep.subr.mxu0 0.0
        %449 = vmatpush1.msra.mxu0 0.0
        %450 = vmatprep.subr.mxu0 0.0
        %451 = vmatpush1.msra.mxu0 0.0
        %452 = vmatprep.subr.mxu0 0.0
        %453 = vmatpush1.msra.mxu0 0.0
        %454 = vmatprep.subr.mxu0 0.0
        %455 = vmatpush1.msra.mxu0 0.0
        %456 = vmatprep.subr.mxu0 0.0
        %457 = vmatpush1.msra.mxu0 0.0
        %458 = vmatprep.subr.mxu0 0.0
        %459 = vmatpush1.msra.mxu0 0.0
        %460 = vmatprep.subr.mxu0 0.0
        %461 = vmatpush1.msra.mxu0 0.0
        %462 = vmatprep.subr.mxu0 0.0
        %463 = vmatpush1.msra.mxu0 0.0
        %464 = vmatprep.subr.mxu0 0.0
        %465 = vmatpush1.msra.mxu0 0.0
        %466 = vmatprep.subr.mxu0 0.0
        %467 = vmatpush1.msra.mxu0 0.0
        %468 = vmatprep.subr.mxu0 0.0
        %469 = vmatpush1.msra.mxu0 0.0
        %470 = vmatprep.subr.mxu0 0.0
        %471 = vmatpush1.msra.mxu0 0.0
        %472 = vmatprep.subr.mxu0 0.0
        %473 = vmatpush1.msra.mxu0 0.0
        %474 = vmatprep.subr.mxu0 0.0
        %475 = vmatpush1.msra.mxu0 0.0
        %476 = vmatprep.subr.mxu0 0.0
        %477 = vmatpush1.msra.mxu0 0.0
        %478 = vmatprep.subr.mxu0 0.0
        %479 = vmatpush1.msra.mxu0 0.0
        %480 = vmatprep.subr.mxu0 0.0
        %481 = vmatpush1.msra.mxu0 0.0
        %482 = vmatprep.subr.mxu0 0.0
        %483 = vmatpush1.msra.mxu0 0.0
        %484 = vmatprep.subr.mxu0 0.0
        %485 = vmatpush1.msra.mxu0 0.0
        %486 = vmatprep.subr.mxu0 0.0
        %487 = vmatpush1.msra.mxu0 0.0
        %488 = vmatprep.subr.mxu0 0.0
        %489 = vmatpush1.msra.mxu0 0.0
        %490 = vmatprep.subr.mxu0 0.0
        %491 = vmatpush1.msra.mxu0 0.0
        %492 = vmatprep.mubr.f32.mxu0 0.0
        %493 = vmatmul.mubr.f32.gmra.mrb[0].mxu0 %v256
        %v494 = vpop.f32.mrb[0].mxu0
        %v495 = vadd.f32 %v365, %v494
        %v496 = vpop.f32.mrb[0].mxu0
        %497 = vmatprep.mubr.f32.mxu0 0.0
        %498 = vmatmul.mubr.f32.gmra.mrb[0].mxu0 %v259
        %v499 = vpop.f32.mrb[0].mxu0
        %v500 = vadd.f32 %v370, %v499
        %v501 = vpop.f32.mrb[0].mxu0
        %502 = vmatprep.mubr.f32.mxu0 0.0
        %503 = vmatmul.mubr.f32.gmra.mrb[0].mxu0 %v262
        %v504 = vpop.f32.mrb[0].mxu0
        %v505 = vadd.f32 %v375, %v504
        %v506 = vpop.f32.mrb[0].mxu0
        %507 = vmatprep.mubr.f32.mxu0 0.0
        %508 = vmatmul.mubr.f32.gmra.mrb[0].mxu0 %v265
        %v509 = vpop.f32.mrb[0].mxu0
        %v510 = vadd.f32 %v380, %v509
        %v511 = vpop.f32.mrb[0].mxu0
        %512 = vmatprep.mubr.f32.mxu0 0.0
        %513 = vmatmul.mubr.f32.gmra.mrb[0].mxu0 %v268
        %v514 = vpop.f32.mrb[0].mxu0
        %v515 = vadd.f32 %v385, %v514
        %v516 = vpop.f32.mrb[0].mxu0
        %517 = vmatprep.mubr.f32.mxu0 0.0
        %518 = vmatmul.mubr.f32.gmra.mrb[0].mxu0 %v271
        %v519 = vpop.f32.mrb[0].mxu0
        %v520 = vadd.f32 %v390, %v519
        %v521 = vpop.f32.mrb[0].mxu0
        %522 = vmatprep.mubr.f32.mxu0 0.0
        %523 = vmatmul.mubr.f32.gmra.mrb[0].mxu0 %v274
        %v524 = vpop.f32.mrb[0].mxu0
        %v525 = vadd.f32 %v395, %v524
        %v526 = vpop.f32.mrb[0].mxu0
        %527 = vmatprep.mubr.f32.mxu0 0.0
        %528 = vmatmul.mubr.f32.gmra.mrb[0].mxu0 %v277
        %v529 = vpop.f32.mrb[0].mxu0
        %v530 = vadd.f32 %v400, %v529
        %v531 = vpop.f32.mrb[0].mxu0
        %532 = vmatprep.mubr.f32.mxu0 0.0
        %533 = vmatmul.mubr.f32.gmra.mrb[0].mxu0 %v280
        %v534 = vpop.f32.mrb[0].mxu0
        %v535 = vadd.f32 %v405, %v534
        %v536 = vpop.f32.mrb[0].mxu0
        %537 = vmatprep.mubr.f32.mxu0 0.0
        %538 = vmatmul.mubr.f32.gmra.mrb[0].mxu0 %v283
        %v539 = vpop.f32.mrb[0].mxu0
        %v540 = vadd.f32 %v410, %v539
        %v541 = vpop.f32.mrb[0].mxu0
        %542 = vmatprep.mubr.f32.mxu0 0.0
        %543 = vmatmul.mubr.f32.gmra.mrb[0].mxu0 %v286
        %v544 = vpop.f32.mrb[0].mxu0
        %v545 = vadd.f32 %v415, %v544
        %v546 = vpop.f32.mrb[0].mxu0
        %547 = vmatprep.mubr.f32.mxu0 0.0
        %548 = vmatmul.mubr.f32.gmra.mrb[0].mxu0 %v289
        %v549 = vpop.f32.mrb[0].mxu0
        %v550 = vadd.f32 %v420, %v549
        %v551 = vpop.f32.mrb[0].mxu0
        %552 = vmatprep.mubr.f32.mxu0 0.0
        %553 = vmatmul.mubr.f32.gmra.mrb[0].mxu0 %v292
        %v554 = vpop.f32.mrb[0].mxu0
        %v555 = vadd.f32 %v425, %v554
        %v556 = vpop.f32.mrb[0].mxu0
        %557 = vdwg.mxu0
        %vm558 = vcmask 785408
        %559 = vst.msk [vmem:[%s165] sm:$0xff] %vm558, %v495
        %560 = vst.msk [vmem:[%s165 + $0x8] sm:$0xff] %vm558, %v500
        %561 = vst.msk [vmem:[%s165 + $0x10] sm:$0xff] %vm558, %v505
        %562 = vst.msk [vmem:[%s165 + $0x18] sm:$0xff] %vm558, %v510
        %563 = vst.msk [vmem:[%s165 + $0x20] sm:$0xff] %vm558, %v515
        %564 = vst.msk [vmem:[%s165 + $0x28] sm:$0xff] %vm558, %v520
        %565 = vst.msk [vmem:[%s165 + $0x30] sm:$0xff] %vm558, %v525
        %566 = vst.msk [vmem:[%s165 + $0x38] sm:$0xff] %vm558, %v530
        %567 = vst.msk [vmem:[%s165 + $0x40] sm:$0xff] %vm558, %v535
        %568 = vst.msk [vmem:[%s165 + $0x48] sm:$0xff] %vm558, %v540
        %569 = vst.msk [vmem:[%s165 + $0x50] sm:$0xff] %vm558, %v545
        %570 = vst.msk [vmem:[%s165 + $0x58] sm:$0xff] %vm558, %v550
        %571 = vst.msk [vmem:[%s165 + $0x60] sm:$0xff] %vm558, %v555
        %s572 = sand.u32 %s71, 1
        %s573 = sand.u32 %s71, 1
        %s574 = smul.addr %s573, 104
        %s575 = scalar_lea.vmem [#allocation4], %s574
        // Predicated region
        $region33: #{tpu_custom_call.1} parent=27 // pred_check
          %p576 = pneg %p81
        $region34: #{tpu_custom_call.1} parent=27 // pred_check_branch
          %578 = sbr.rel (%p576) target = $region36
        $region35: #{tpu_custom_call.1} parent=27 // pred_region
          %s579 = smul.u32 13, %s16
          %s580 = ssub.s32 25, %s579
          %p581 = scmp.lt.s32.totalorder %s580, 13
          %s582 = scalar_select %p581, %s580, 13
          %s583 = smul.u32 128, %s582
          %p584 = scmp.ne.s32.totalorder 0, %s583
          %s585 = smul.addr %s579, 8
          %s586 = scalar_lea.vmem %s2, %s585
          // Predicated region
          $region37: #{tpu_custom_call.1} parent=35 // pred_check
            %p587 = pneg %p584
          $region38: #{tpu_custom_call.1} parent=35 // pred_check_branch
            %589 = sbr.rel (%p587) target = $region40
          $region39: #{tpu_custom_call.1} parent=35 // pred_region
            // Predicated region
            $region41: #{tpu_custom_call.1} parent=39 // pred_check
              _
            $region42: #{tpu_custom_call.1} parent=39 // pred_check_branch
              %591 = sbr.rel (0) target = $region44
            $region43: #{tpu_custom_call.1} parent=39 // pred_region
              // Predicated region
              $region63: #{tpu_custom_call.1} parent=43 // pred_check
                _
              $region64: #{tpu_custom_call.1} parent=43 // pred_check_branch
                %665 = sbr.rel (0) target = $region66
              $region65: #{tpu_custom_call.1} parent=43 // pred_region
                %s666 = sdiv.u32.pop %s582, 13
                %s667 = srem.u32.pop %s582, 13
                // While loop
                $region67: #{tpu_custom_call.1} parent=65 // loop_pre_header
                  _
                $region68: #{tpu_custom_call.1} parent=65 // loop_header
                  %s669 = sphi 0, %s671
                  %p670 = scmp.ge.s32.totalorder %s669, %s666
                  %s674 = sphi 0, %s705
                  %s675 = sphi %s575, %s708
                  %s676 = sphi %s586, %s709
                $region69: #{tpu_custom_call.1} parent=65 // loop_header_branch
                  %673 = sbr.rel (%p670) target = $region73
                $region70: #{tpu_custom_call.1} parent=65 // loop_body
                  %v677 = vld [vmem:[%s675] sm:$0xff]
                  %678 = vst [vmem:[%s676] sm:$0xff] %v677
                  %v679 = vld [vmem:[%s675 + $0x8] sm:$0xff]
                  %680 = vst [vmem:[%s676 + $0x8] sm:$0xff] %v679
                  %v681 = vld [vmem:[%s675 + $0x10] sm:$0xff]
                  %682 = vst [vmem:[%s676 + $0x10] sm:$0xff] %v681
                  %v683 = vld [vmem:[%s675 + $0x18] sm:$0xff]
                  %684 = vst [vmem:[%s676 + $0x18] sm:$0xff] %v683
                  %v685 = vld [vmem:[%s675 + $0x20] sm:$0xff]
                  %686 = vst [vmem:[%s676 + $0x20] sm:$0xff] %v685
                  %v687 = vld [vmem:[%s675 + $0x28] sm:$0xff]
                  %688 = vst [vmem:[%s676 + $0x28] sm:$0xff] %v687
                  %v689 = vld [vmem:[%s675 + $0x30] sm:$0xff]
                  %690 = vst [vmem:[%s676 + $0x30] sm:$0xff] %v689
                  %v691 = vld [vmem:[%s675 + $0x38] sm:$0xff]
                  %692 = vst [vmem:[%s676 + $0x38] sm:$0xff] %v691
                  %v693 = vld [vmem:[%s675 + $0x40] sm:$0xff]
                  %694 = vst [vmem:[%s676 + $0x40] sm:$0xff] %v693
                  %v695 = vld [vmem:[%s675 + $0x48] sm:$0xff]
                  %696 = vst [vmem:[%s676 + $0x48] sm:$0xff] %v695
                  %v697 = vld [vmem:[%s675 + $0x50] sm:$0xff]
                  %698 = vst [vmem:[%s676 + $0x50] sm:$0xff] %v697
                  %v699 = vld [vmem:[%s675 + $0x58] sm:$0xff]
                  %700 = vst [vmem:[%s676 + $0x58] sm:$0xff] %v699
                  %v701 = vld [vmem:[%s675 + $0x60] sm:$0xff]
                  %702 = vst [vmem:[%s676 + $0x60] sm:$0xff] %v701
                  %s703 = sadd.s32 1, %s674
                  %p704 = scmp.ge.s32.totalorder %s703, %s666
                  %s705 = scalar_select %p704, 0, %s703
                  %s706 = smul.u32 %s705, 104
                  %s707 = smul.u32 %s705, 104
                  %s708 = scalar_lea.vmem %s575, %s706 [#allocation4]
                  %s709 = scalar_lea.vmem %s586, %s707
                $region71: #{tpu_custom_call.1} parent=65 // loop_footer
                  %s671 = sadd.s32 %s669, 1
                $region72: #{tpu_custom_call.1} parent=65 // loop_footer_branch
                  %668 = sbr.rel target = $region68
                $region73: #{tpu_custom_call.1} parent=65 // loop_exit
                  _
                %s710 = sdiv.u32.pop %s582, 13
                %s711 = srem.u32.pop %s582, 13
                %s712 = smul.u32 %s710, 13
                %s713 = smul.u32 8, %s712
                %s714 = scalar_lea.vmem %s575, %s713 [#allocation4]
                %s715 = smul.u32 8, %s712
                %s716 = scalar_lea.vmem %s586, %s715
                // While loop
                $region74: #{tpu_custom_call.1} parent=65 // loop_pre_header
                  _
                $region75: #{tpu_custom_call.1} parent=65 // loop_header
                  %s718 = sphi 0, %s720
                  %p719 = scmp.ge.s32.totalorder %s718, %s711
                  %s723 = sphi 0, %s730
                  %s724 = sphi %s714, %s733
                  %s725 = sphi %s716, %s734
                $region76: #{tpu_custom_call.1} parent=65 // loop_header_branch
                  %722 = sbr.rel (%p719) target = $region80
                $region77: #{tpu_custom_call.1} parent=65 // loop_body
                  %v726 = vld [vmem:[%s724] sm:$0xff]
                  %727 = vst [vmem:[%s725] sm:$0xff] %v726
                  %s728 = sadd.s32 1, %s723
                  %p729 = scmp.ge.s32.totalorder %s728, %s711
                  %s730 = scalar_select %p729, 0, %s728
                  %s731 = smul.u32 %s730, 8
                  %s732 = smul.u32 %s730, 8
                  %s733 = scalar_lea.vmem %s714, %s731 [#allocation4]
                  %s734 = scalar_lea.vmem %s716, %s732
                $region78: #{tpu_custom_call.1} parent=65 // loop_footer
                  %s720 = sadd.s32 %s718, 1
                $region79: #{tpu_custom_call.1} parent=65 // loop_footer_branch
                  %717 = sbr.rel target = $region75
                $region80: #{tpu_custom_call.1} parent=65 // loop_exit
                  _
              $region66: #{tpu_custom_call.1} parent=43 // pred_fallthru
                _
              // Predicated region
              $region81: #{tpu_custom_call.1} parent=43 // pred_check
                _
              $region82: #{tpu_custom_call.1} parent=43 // pred_check_branch
                %736 = sbr.rel target = $region84
              $region83: #{tpu_custom_call.1} parent=43 // pred_region
                _
              $region84: #{tpu_custom_call.1} parent=43 // pred_fallthru
                _
            $region44: #{tpu_custom_call.1} parent=39 // pred_fallthru
              _
            // Predicated region
            $region45: #{tpu_custom_call.1} parent=39 // pred_check
              _
            $region46: #{tpu_custom_call.1} parent=39 // pred_check_branch
              %593 = sbr.rel target = $region48
            $region47: #{tpu_custom_call.1} parent=39 // pred_region
              %s595 = sdiv.u32.pop %s582, 13
              %s596 = srem.u32.pop %s582, 13
              // While loop
              $region49: #{tpu_custom_call.1} parent=47 // loop_pre_header
                _
              $region50: #{tpu_custom_call.1} parent=47 // loop_header
                %s598 = sphi 0, %s600
                %p599 = scmp.ge.s32.totalorder %s598, %s595
                %s603 = sphi 0, %s634
                %s604 = sphi %s575, %s637
                %s605 = sphi %s586, %s638
              $region51: #{tpu_custom_call.1} parent=47 // loop_header_branch
                %602 = sbr.rel (%p599) target = $region55
              $region52: #{tpu_custom_call.1} parent=47 // loop_body
                %v606 = vld [vmem:[%s604] sm:$0xff]
                %607 = vst [vmem:[%s605] sm:$0xff] %v606
                %v608 = vld [vmem:[%s604 + $0x8] sm:$0xff]
                %609 = vst [vmem:[%s605 + $0x8] sm:$0xff] %v608
                %v610 = vld [vmem:[%s604 + $0x10] sm:$0xff]
                %611 = vst [vmem:[%s605 + $0x10] sm:$0xff] %v610
                %v612 = vld [vmem:[%s604 + $0x18] sm:$0xff]
                %613 = vst [vmem:[%s605 + $0x18] sm:$0xff] %v612
                %v614 = vld [vmem:[%s604 + $0x20] sm:$0xff]
                %615 = vst [vmem:[%s605 + $0x20] sm:$0xff] %v614
                %v616 = vld [vmem:[%s604 + $0x28] sm:$0xff]
                %617 = vst [vmem:[%s605 + $0x28] sm:$0xff] %v616
                %v618 = vld [vmem:[%s604 + $0x30] sm:$0xff]
                %619 = vst [vmem:[%s605 + $0x30] sm:$0xff] %v618
                %v620 = vld [vmem:[%s604 + $0x38] sm:$0xff]
                %621 = vst [vmem:[%s605 + $0x38] sm:$0xff] %v620
                %v622 = vld [vmem:[%s604 + $0x40] sm:$0xff]
                %623 = vst [vmem:[%s605 + $0x40] sm:$0xff] %v622
                %v624 = vld [vmem:[%s604 + $0x48] sm:$0xff]
                %625 = vst [vmem:[%s605 + $0x48] sm:$0xff] %v624
                %v626 = vld [vmem:[%s604 + $0x50] sm:$0xff]
                %627 = vst [vmem:[%s605 + $0x50] sm:$0xff] %v626
                %v628 = vld [vmem:[%s604 + $0x58] sm:$0xff]
                %629 = vst [vmem:[%s605 + $0x58] sm:$0xff] %v628
                %v630 = vld [vmem:[%s604 + $0x60] sm:$0xff]
                %631 = vst [vmem:[%s605 + $0x60] sm:$0xff] %v630
                %s632 = sadd.s32 1, %s603
                %p633 = scmp.ge.s32.totalorder %s632, %s595
                %s634 = scalar_select %p633, 0, %s632
                %s635 = smul.u32 %s634, 104
                %s636 = smul.u32 %s634, 104
                %s637 = scalar_lea.vmem %s575, %s635 [#allocation4]
                %s638 = scalar_lea.vmem %s586, %s636
              $region53: #{tpu_custom_call.1} parent=47 // loop_footer
                %s600 = sadd.s32 %s598, 1
              $region54: #{tpu_custom_call.1} parent=47 // loop_footer_branch
                %597 = sbr.rel target = $region50
              $region55: #{tpu_custom_call.1} parent=47 // loop_exit
                _
              %s639 = sdiv.u32.pop %s582, 13
              %s640 = srem.u32.pop %s582, 13
              %s641 = smul.u32 %s639, 13
              %s642 = smul.u32 8, %s641
              %s643 = scalar_lea.vmem %s575, %s642 [#allocation4]
              %s644 = smul.u32 8, %s641
              %s645 = scalar_lea.vmem %s586, %s644
              // While loop
              $region56: #{tpu_custom_call.1} parent=47 // loop_pre_header
                _
              $region57: #{tpu_custom_call.1} parent=47 // loop_header
                %s647 = sphi 0, %s649
                %p648 = scmp.ge.s32.totalorder %s647, %s640
                %s652 = sphi 0, %s659
                %s653 = sphi %s643, %s662
                %s654 = sphi %s645, %s663
              $region58: #{tpu_custom_call.1} parent=47 // loop_header_branch
                %651 = sbr.rel (%p648) target = $region62
              $region59: #{tpu_custom_call.1} parent=47 // loop_body
                %v655 = vld [vmem:[%s653] sm:$0xff]
                %656 = vst [vmem:[%s654] sm:$0xff] %v655
                %s657 = sadd.s32 1, %s652
                %p658 = scmp.ge.s32.totalorder %s657, %s640
                %s659 = scalar_select %p658, 0, %s657
                %s660 = smul.u32 %s659, 8
                %s661 = smul.u32 %s659, 8
                %s662 = scalar_lea.vmem %s643, %s660 [#allocation4]
                %s663 = scalar_lea.vmem %s645, %s661
              $region60: #{tpu_custom_call.1} parent=47 // loop_footer
                %s649 = sadd.s32 %s647, 1
              $region61: #{tpu_custom_call.1} parent=47 // loop_footer_branch
                %646 = sbr.rel target = $region57
              $region62: #{tpu_custom_call.1} parent=47 // loop_exit
                _
            $region48: #{tpu_custom_call.1} parent=39 // pred_fallthru
              _
          $region40: #{tpu_custom_call.1} parent=35 // pred_fallthru
            _
          %737 = vnop
        $region36: #{tpu_custom_call.1} parent=27 // pred_fallthru
          _
      $region28: #{tpu_custom_call.1} parent=5 // pred_fallthru
        _
      %p738 = scmp.le.s32.totalorder 2, %s11
      // Predicated region
      $region85: #{tpu_custom_call.1} parent=5 // pred_check
        %p739 = pneg %p738
      $region86: #{tpu_custom_call.1} parent=5 // pred_check_branch
        %741 = sbr.rel (%p739) target = $region88
      $region87: #{tpu_custom_call.1} parent=5 // pred_region
        %s742 = ssub.s32 %s11, 2
        // Predicated region
        $region89: #{tpu_custom_call.1} parent=87 // pred_check
          %p743 = pneg %p87
        $region90: #{tpu_custom_call.1} parent=87 // pred_check_branch
          %745 = sbr.rel (%p743) target = $region92
        $region91: #{tpu_custom_call.1} parent=87 // pred_region
          %s746 = sand.u32 %s72, 1
          %s747 = sand.u32 %s72, 1
          %s748 = smul.addr %s747, 104
          %s749 = scalar_lea.vmem [#allocation4], %s748
        $region92: #{tpu_custom_call.1} parent=87 // pred_fallthru
          _
      $region88: #{tpu_custom_call.1} parent=5 // pred_fallthru
        _
    $region6: #{tpu_custom_call.1} parent=1 // loop_footer
      %s15 = sadd.s32 1, %s11
    $region7: #{tpu_custom_call.1} parent=1 // loop_footer_branch
      %10 = sbr.rel target = $region3
    $region8: #{tpu_custom_call.1} parent=1 // loop_exit
      _
    %750 = vsyncpa [#allocation3], 1
    %s751 = scalar_lea.sflag [#allocation3], 1
    %752 = vsyncpa %s751, 1

</llo_original>
